<compile_context>
chip_gen: v7x
topology: tpu7x:2x2x1
jax: 0.10.0
libtpu: 0.0.40
codegen_flags: <defaults>
</compile_context>

<pallas_src>
import jax
import jax.numpy as jnp
from jax import lax
from jax.experimental import pallas as pl
from jax.experimental.pallas import tpu as pltpu


# ----------------------------------------------------------------------------
# Kernel 1: QA head  -> relu(x @ W^T + b), emitted as two lane-dense rows.
# ----------------------------------------------------------------------------
def qa_head_kernel(x_ref, wt_ref, b_ref, s_ref, e_ref):
    # x_ref : [TM, H] bf16   row tile of the flattened hidden states
    # wt_ref: [2, H]  bf16   torch-Linear weight layout [out, in]; resident
    # b_ref : [2]     f32    bias in SMEM
    # s_ref : [1, TM] f32    start-logits row tile (lane-dense)
    # e_ref : [1, TM] f32    end-logits   row tile (lane-dense)
    logits_t = lax.dot_general(
        wt_ref[...], x_ref[...],
        dimension_numbers=(((1,), (1,)), ((), ())),   # contract H with H -> [2, TM]
        preferred_element_type=jnp.float32)
    b0 = b_ref[0]
    b1 = b_ref[1]
    s_ref[...] = jnp.maximum(logits_t[0:1, :] + b0, 0.0)   # ReLU
    e_ref[...] = jnp.maximum(logits_t[1:2, :] + b1, 0.0)   # ReLU


def qa_head(hidden, w_t, b, *, tile_m=512):
    """hidden [B,S,H] f32, w_t [2,H], b [2] -> (start_logits [B,S], end_logits [B,S])."""
    B, S, H = hidden.shape
    BS = B * S
    # bf16 in HBM: this kernel is memory-bound (AI ~1 flop/byte), so halving
    # the HBM bytes of x is ~2x wall-clock on v6e/v7x; accumulate in f32.
    x2d = hidden.reshape(BS, H).astype(jnp.bfloat16)
    wt = w_t.astype(jnp.bfloat16)
    bias = b.astype(jnp.float32)

    # TILE_M: full slab when tiny, otherwise 512 rows (multiple of 8 and 128,
    # so ragged last blocks remain legal). 2 x (512*H) bf16 tiles stay far
    # under the v7x 64 MiB VMEM budget even for H=1024.
    tm = BS if BS <= tile_m else tile_m
    grid = (pl.cdiv(BS, tm),)

    s2d, e2d = pl.pallas_call(
        qa_head_kernel,
        out_shape=(jax.ShapeDtypeStruct((1, BS), jnp.float32),
                   jax.ShapeDtypeStruct((1, BS), jnp.float32)),
        grid=grid,
        in_specs=[
            pl.BlockSpec((tm, H), lambda i: (i, 0)),             # x row tile (pipelined)
            pl.BlockSpec((2, H), lambda i: (0, 0)),              # W^T resident every step
            pl.BlockSpec(memory_space=pltpu.MemorySpace.SMEM),   # bias scalars
        ],
        out_specs=(
            pl.BlockSpec((1, tm), lambda i: (0, i)),
            pl.BlockSpec((1, tm), lambda i: (0, i)),
        ),
        compiler_params=pltpu.CompilerParams(
            dimension_semantics=("parallel",)),                  # megacore on v7x
    )(x2d, wt, bias)
    # (1, BS) -> (B, S): contiguous row-major reshape, no strided slice.
    return s2d.reshape(B, S), e2d.reshape(B, S)


# ----------------------------------------------------------------------------
# Kernel 2: fused masked CrossEntropy for (start, end) in ONE pallas_call.
#   loss_i = logsumexp(logits_i) - logits_i[label_i];  loss_i = 0 if label_i==0
#   per-head loss = mean over the full batch (matches torch loss.mean()).
# ----------------------------------------------------------------------------
def fused_masked_ce_kernel(sl_ref, el_ref, start_ref, end_ref, o_ref):
    # sl/el: [B,S] f32 (VMEM); start/end: [B,1] i32 (VMEM); o: [1,1] f32 (SMEM)
    def masked_ce(logits, labels):
        Bv, Sv = logits.shape
        m = jnp.max(logits, axis=-1, keepdims=True)                           # [B,1]
        lse = m + jnp.log(jnp.sum(jnp.exp(logits - m), axis=-1, keepdims=True))
        col = lax.broadcasted_iota(jnp.int32, (Bv, Sv), 1)                    # [B,S]
        onehot = (col == labels).astype(jnp.float32)                          # [B,S]
        picked = jnp.sum(logits * onehot, axis=-1, keepdims=True)             # [B,1]
        loss = jnp.where(labels != 0, lse - picked, 0.0)                      # [B,1]
        return jnp.sum(loss) / jnp.float32(Bv)                                # scalar

    o_ref[0, 0] = (masked_ce(sl_ref[...], start_ref[...])
                   + masked_ce(el_ref[...], end_ref[...]))


def masked_ce_loss_pair(start_logits, end_logits, start, end):
    """start/end_logits: [B,S] f32; start/end: [B] int -> scalar f32 loss."""
    B, S = start_logits.shape
    out = pl.pallas_call(
        fused_masked_ce_kernel,
        out_shape=jax.ShapeDtypeStruct((1, 1), jnp.float32),
        in_specs=[
            pl.BlockSpec(memory_space=pltpu.MemorySpace.VMEM),
            pl.BlockSpec(memory_space=pltpu.MemorySpace.VMEM),
            pl.BlockSpec(memory_space=pltpu.MemorySpace.VMEM),
            pl.BlockSpec(memory_space=pltpu.MemorySpace.VMEM),
        ],
        out_specs=pl.BlockSpec(memory_space=pltpu.MemorySpace.SMEM),
    )(start_logits.astype(jnp.float32), end_logits.astype(jnp.float32),
      start.reshape(B, 1).astype(jnp.int32), end.reshape(B, 1).astype(jnp.int32))
    return out[0, 0]


# ----------------------------------------------------------------------------
# QAModule forward (non-pretrained branch of the PyTorch module)
# ----------------------------------------------------------------------------
def qa_module_forward(params, input_ids, attention_mask, start=None, end=None):
    # Backbone stand-in: deterministic embedding lookup -> last_hidden_state.
    # (attention_mask only gates attention in a real BERT; unused by stand-in)
    hidden = params["emb"][input_ids]                    # [B, S, H] f32

    start_logits, end_logits = qa_head(hidden, params["w_t"], params["b"])

    if start is not None:
        loss = masked_ce_loss_pair(start_logits, end_logits, start, end)
        return loss, {"start_logits": start_logits, "end_logits": end_logits}
    return {"start_logits": start_logits, "end_logits": end_logits}


# ----------------------------------------------------------------------------
# Reference (plain JAX, f32) for correctness check
# ----------------------------------------------------------------------------
def reference_forward(params, input_ids, attention_mask, start, end):
    hidden = params["emb"][input_ids]
    logits = jnp.maximum(hidden @ params["w_t"].T + params["b"], 0.0)
    sl, el = logits[:, :, 0], logits[:, :, 1]

    def ce(pred, label):
        lse = jax.nn.logsumexp(pred, axis=-1)
        picked = jnp.take_along_axis(pred, label[:, None], axis=-1)[:, 0]
        loss = jnp.where(label != 0, lse - picked, 0.0)
        return jnp.mean(loss)

    return ce(sl, start) + ce(el, end), sl, el


if __name__ == "__main__":
    B, S, H, VOCAB = 2, 8, 32, 64

    key = jax.random.PRNGKey(0)
    k_emb, k_w, k_b, k_ids, k_start, k_end = jax.random.split(key, 6)

    params = {
        "emb": jax.random.normal(k_emb, (VOCAB, H), dtype=jnp.float32) * 0.1,
        # torch Linear weight layout [out_features, in_features] = [2, H]
        "w_t": jax.random.normal(k_w, (2, H), dtype=jnp.float32) * 0.1,
        "b": jax.random.normal(k_b, (2,), dtype=jnp.float32) * 0.1,
    }

    input_ids = jax.random.randint(k_ids, (B, S), 0, VOCAB, dtype=jnp.int32)
    attention_mask = jnp.ones((B, S), dtype=jnp.int32)
    start = jax.random.randint(k_start, (B,), 0, S, dtype=jnp.int32)
    end = jax.random.randint(k_end, (B,), 0, S, dtype=jnp.int32)

    loss, out = jax.jit(qa_module_forward)(params, input_ids, attention_mask, start, end)
    jax.block_until_ready(loss)
    jax.block_until_ready(out["start_logits"])
    jax.block_until_ready(out["end_logits"])

    ref_loss, ref_sl, ref_el = reference_forward(params, input_ids, attention_mask, start, end)
    # Tolerance accounts for the bf16 MXU operands (f32 accumulate) in the kernel.
    assert jnp.allclose(out["start_logits"], ref_sl, atol=1e-2, rtol=1e-2)
    assert jnp.allclose(out["end_logits"], ref_el, atol=1e-2, rtol=1e-2)
    assert jnp.allclose(loss, ref_loss, atol=1e-2, rtol=1e-2)

    print("KERNEL_OK")
</pallas_src>

<mosaic_0001>
module attributes {stable_mosaic.version = 11 : i64} {
  func.func @qa_head_kernel(%arg0: i32, %arg1: memref<16x32xbf16, #tpu.memory_space<vmem>>, %arg2: memref<2x32xbf16, #tpu.memory_space<vmem>>, %arg3: memref<2xf32, #tpu.memory_space<smem>>, %arg4: memref<1x16xf32, #tpu.memory_space<vmem>>, %arg5: memref<1x16xf32, #tpu.memory_space<vmem>>) attributes {dimension_semantics = [#tpu.dimension_semantics<parallel>], iteration_bounds = array<i64: 1>, scalar_prefetch = 0 : i64, scratch_operands = 0 : i64, tpu.core_type = #tpu.core_type<tc>, window_params = [{transform_indices = @transform_0, window_bounds = array<i64: 16, 32>}, {pipeline_mode = #tpu.pipeline_mode<synchronous>, transform_indices = @transform_1, window_bounds = array<i64: 2, 32>}, {transform_indices = @transform_2, window_bounds = array<i64: 2>}, {transform_indices = @transform_3, window_bounds = array<i64: 1, 16>}, {transform_indices = @transform_4, window_bounds = array<i64: 1, 16>}]} {
    %c0 = arith.constant 0 : index
    %c0_0 = arith.constant 0 : index
    %0 = vector.load %arg2[%c0, %c0_0] : memref<2x32xbf16, #tpu.memory_space<vmem>>, vector<2x32xbf16>
    %c0_1 = arith.constant 0 : index
    %c0_2 = arith.constant 0 : index
    %1 = vector.load %arg1[%c0_1, %c0_2] : memref<16x32xbf16, #tpu.memory_space<vmem>>, vector<16x32xbf16>
    %cst = arith.constant dense<0.000000e+00> : vector<2x16xf32>
    %2 = tpu.matmul %0, %1, %cst {dimension_numbers = #tpu.dot_dimension_numbers<[1], [1], [0], [0], [0, 0, 1, 0], [], []>} : vector<2x32xbf16>, vector<16x32xbf16>, vector<2x16xf32> -> vector<2x16xf32>
    %c0_3 = arith.constant 0 : index
    %3 = memref.load %arg3[%c0_3] : memref<2xf32, #tpu.memory_space<smem>>
    %c1 = arith.constant 1 : index
    %4 = memref.load %arg3[%c1] : memref<2xf32, #tpu.memory_space<smem>>
    %5 = vector.extract_strided_slice %2 {offsets = [0, 0], sizes = [1, 16], strides = [1, 1]} : vector<2x16xf32> to vector<1x16xf32>
    %6 = vector.broadcast %3 : f32 to vector<1x16xf32>
    %7 = arith.addf %5, %6 : vector<1x16xf32>
    %cst_4 = arith.constant 0.000000e+00 : f32
    %8 = vector.broadcast %cst_4 : f32 to vector<1x16xf32>
    %9 = arith.maximumf %7, %8 : vector<1x16xf32>
    %c0_5 = arith.constant 0 : index
    %c0_6 = arith.constant 0 : index
    %10 = vector.load %arg4[%c0_5, %c0_6] : memref<1x16xf32, #tpu.memory_space<vmem>>, vector<1x16xf32>
    tpu.vector_store %arg4[%c0_5, %c0_6], %9 {strides = array<i32>} : memref<1x16xf32, #tpu.memory_space<vmem>>, vector<1x16xf32>,
    %11 = vector.extract_strided_slice %2 {offsets = [1, 0], sizes = [1, 16], strides = [1, 1]} : vector<2x16xf32> to vector<1x16xf32>
    %12 = vector.broadcast %4 : f32 to vector<1x16xf32>
    %13 = arith.addf %11, %12 : vector<1x16xf32>
    %cst_7 = arith.constant 0.000000e+00 : f32
    %14 = vector.broadcast %cst_7 : f32 to vector<1x16xf32>
    %15 = arith.maximumf %13, %14 : vector<1x16xf32>
    %c0_8 = arith.constant 0 : index
    %c0_9 = arith.constant 0 : index
    %16 = vector.load %arg5[%c0_8, %c0_9] : memref<1x16xf32, #tpu.memory_space<vmem>>, vector<1x16xf32>
    tpu.vector_store %arg5[%c0_8, %c0_9], %15 {strides = array<i32>} : memref<1x16xf32, #tpu.memory_space<vmem>>, vector<1x16xf32>,
    return
  }
  func.func @transform_0(%arg0: i32) -> (i32, i32) {
    %c0_i32 = arith.constant 0 : i32
    %c0_i32_0 = arith.constant 0 : i32
    return %arg0, %c0_i32 : i32, i32
  }
  func.func @transform_1(%arg0: i32) -> (i32, i32) {
    %c0_i32 = arith.constant 0 : i32
    %c0_i32_0 = arith.constant 0 : i32
    %c0_i32_1 = arith.constant 0 : i32
    return %c0_i32, %c0_i32_0 : i32, i32
  }
  func.func @transform_2(%arg0: i32) -> i32 {
    %c0_i32 = arith.constant 0 : i32
    %c0_i32_0 = arith.constant 0 : i32
    return %c0_i32 : i32
  }
  func.func @transform_3(%arg0: i32) -> (i32, i32) {
    %c0_i32 = arith.constant 0 : i32
    %c0_i32_0 = arith.constant 0 : i32
    return %c0_i32, %arg0 : i32, i32
  }
  func.func @transform_4(%arg0: i32) -> (i32, i32) {
    %c0_i32 = arith.constant 0 : i32
    %c0_i32_0 = arith.constant 0 : i32
    return %c0_i32, %arg0 : i32, i32
  }
}

module attributes {stable_mosaic.version = 11 : i64} {
  func.func @fused_masked_ce_kernel(%arg0: memref<2x8xf32, #tpu.memory_space<vmem>>, %arg1: memref<2x8xf32, #tpu.memory_space<vmem>>, %arg2: memref<2x1xi32, #tpu.memory_space<vmem>>, %arg3: memref<2x1xi32, #tpu.memory_space<vmem>>, %arg4: memref<1x1xf32, #tpu.memory_space<smem>>) attributes {dimension_semantics = [], scalar_prefetch = 0 : i64, scratch_operands = 0 : i64, tpu.core_type = #tpu.core_type<tc>} {
    %c0 = arith.constant 0 : index
    %c0_0 = arith.constant 0 : index
    %0 = vector.load %arg0[%c0, %c0_0] : memref<2x8xf32, #tpu.memory_space<vmem>>, vector<2x8xf32>
    %c0_1 = arith.constant 0 : index
    %c0_2 = arith.constant 0 : index
    %1 = vector.load %arg2[%c0_1, %c0_2] : memref<2x1xi32, #tpu.memory_space<vmem>>, vector<2x1xi32>
    %cst = arith.constant dense<0xFF800000> : vector<2xf32>
    %2 = vector.multi_reduction <maximumf>, %0, %cst [1] : vector<2x8xf32> to vector<2xf32>
    %3 = vector.shape_cast %2 : vector<2xf32> to vector<2x1xf32>
    %4 = vector.broadcast %3 : vector<2x1xf32> to vector<2x8xf32>
    %5 = arith.subf %0, %4 : vector<2x8xf32>
    %6 = math.exp %5 : vector<2x8xf32>
    %cst_3 = arith.constant dense<0.000000e+00> : vector<2xf32>
    %7 = vector.multi_reduction <add>, %6, %cst_3 [1] : vector<2x8xf32> to vector<2xf32>
    %8 = vector.shape_cast %7 : vector<2xf32> to vector<2x1xf32>
    %9 = math.log %8 : vector<2x1xf32>
    %10 = arith.addf %3, %9 : vector<2x1xf32>
    %11 = tpu.iota {dimensions = array<i32: 1>} : vector<2x8xi32>
    %12 = vector.broadcast %1 : vector<2x1xi32> to vector<2x8xi32>
    %13 = arith.cmpi eq, %11, %12 : vector<2x8xi32>
    %14 = arith.extui %13 : vector<2x8xi1> to vector<2x8xi32>
    %15 = arith.sitofp %14 : vector<2x8xi32> to vector<2x8xf32>
    %16 = arith.mulf %0, %15 : vector<2x8xf32>
    %cst_4 = arith.constant dense<0.000000e+00> : vector<2xf32>
    %17 = vector.multi_reduction <add>, %16, %cst_4 [1] : vector<2x8xf32> to vector<2xf32>
    %18 = vector.shape_cast %17 : vector<2xf32> to vector<2x1xf32>
    %c0_i32 = arith.constant 0 : i32
    %19 = vector.broadcast %c0_i32 : i32 to vector<2x1xi32>
    %20 = arith.cmpi ne, %1, %19 : vector<2x1xi32>
    %21 = arith.subf %10, %18 : vector<2x1xf32>
    %cst_5 = arith.constant 0.000000e+00 : f32
    %22 = vector.broadcast %cst_5 : f32 to vector<2x1xf32>
    %23 = arith.select %20, %21, %22 : vector<2x1xi1>, vector<2x1xf32>
    %24 = vector.shape_cast %23 : vector<2x1xf32> to vector<1x2x1xf32>
    %cst_6 = arith.constant dense<0.000000e+00> : vector<1xf32>
    %25 = vector.multi_reduction <add>, %24, %cst_6 [1, 2] : vector<1x2x1xf32> to vector<1xf32>
    %26 = vector.shape_cast %25 : vector<1xf32> to vector<1x1x1xf32>
    %27 = vector.extract %26[0, 0, 0] : f32 from vector<1x1x1xf32>
    %cst_7 = arith.constant 2.000000e+00 : f32
    %28 = arith.divf %27, %cst_7 : f32
    %c0_8 = arith.constant 0 : index
    %c0_9 = arith.constant 0 : index
    %29 = vector.load %arg1[%c0_8, %c0_9] : memref<2x8xf32, #tpu.memory_space<vmem>>, vector<2x8xf32>
    %c0_10 = arith.constant 0 : index
    %c0_11 = arith.constant 0 : index
    %30 = vector.load %arg3[%c0_10, %c0_11] : memref<2x1xi32, #tpu.memory_space<vmem>>, vector<2x1xi32>
    %cst_12 = arith.constant dense<0xFF800000> : vector<2xf32>
    %31 = vector.multi_reduction <maximumf>, %29, %cst_12 [1] : vector<2x8xf32> to vector<2xf32>
    %32 = vector.shape_cast %31 : vector<2xf32> to vector<2x1xf32>
    %33 = vector.broadcast %32 : vector<2x1xf32> to vector<2x8xf32>
    %34 = arith.subf %29, %33 : vector<2x8xf32>
    %35 = math.exp %34 : vector<2x8xf32>
    %cst_13 = arith.constant dense<0.000000e+00> : vector<2xf32>
    %36 = vector.multi_reduction <add>, %35, %cst_13 [1] : vector<2x8xf32> to vector<2xf32>
    %37 = vector.shape_cast %36 : vector<2xf32> to vector<2x1xf32>
    %38 = math.log %37 : vector<2x1xf32>
    %39 = arith.addf %32, %38 : vector<2x1xf32>
    %40 = tpu.iota {dimensions = array<i32: 1>} : vector<2x8xi32>
    %41 = vector.broadcast %30 : vector<2x1xi32> to vector<2x8xi32>
    %42 = arith.cmpi eq, %40, %41 : vector<2x8xi32>
    %43 = arith.extui %42 : vector<2x8xi1> to vector<2x8xi32>
    %44 = arith.sitofp %43 : vector<2x8xi32> to vector<2x8xf32>
    %45 = arith.mulf %29, %44 : vector<2x8xf32>
    %cst_14 = arith.constant dense<0.000000e+00> : vector<2xf32>
    %46 = vector.multi_reduction <add>, %45, %cst_14 [1] : vector<2x8xf32> to vector<2xf32>
    %47 = vector.shape_cast %46 : vector<2xf32> to vector<2x1xf32>
    %c0_i32_15 = arith.constant 0 : i32
    %48 = vector.broadcast %c0_i32_15 : i32 to vector<2x1xi32>
    %49 = arith.cmpi ne, %30, %48 : vector<2x1xi32>
    %50 = arith.subf %39, %47 : vector<2x1xf32>
    %cst_16 = arith.constant 0.000000e+00 : f32
    %51 = vector.broadcast %cst_16 : f32 to vector<2x1xf32>
    %52 = arith.select %49, %50, %51 : vector<2x1xi1>, vector<2x1xf32>
    %53 = vector.shape_cast %52 : vector<2x1xf32> to vector<1x2x1xf32>
    %cst_17 = arith.constant dense<0.000000e+00> : vector<1xf32>
    %54 = vector.multi_reduction <add>, %53, %cst_17 [1, 2] : vector<1x2x1xf32> to vector<1xf32>
    %55 = vector.shape_cast %54 : vector<1xf32> to vector<1x1x1xf32>
    %56 = vector.extract %55[0, 0, 0] : f32 from vector<1x1x1xf32>
    %cst_18 = arith.constant 2.000000e+00 : f32
    %57 = arith.divf %56, %cst_18 : f32
    %58 = arith.addf %28, %57 : f32
    %c0_19 = arith.constant 0 : index
    %c0_20 = arith.constant 0 : index
    %59 = memref.load %arg4[%c0_19, %c0_20] : memref<1x1xf32, #tpu.memory_space<smem>>
    memref.store %58, %arg4[%c0_19, %c0_20] : memref<1x1xf32, #tpu.memory_space<smem>>
    return
  }
}

</mosaic_0001>

<llo_original>
// kernel: qa_module_forward.3
$region0: #{qa_module_forward.3}
  #allocation0 [shape = 'u32[]', space=smem, size = 0x4, offset = 0x4, fixed_abs, tag = 'smem constant byte address 0x4 - core index']
  #allocation1 [shape = 'u32[144,128]{1,0:T(1,128)}', space=vmem, size = 0x12000, scoped, tag = 'internal scratch']
  %s0 = inlined_call_operand.vmem [shape: f32[2,8], index: 0, kind: input, shape index: {}]
  %s1 = inlined_call_operand.vmem [shape: f32[2,8], index: 1, kind: input, shape index: {}]
  %s2 = inlined_call_operand.vmem [shape: s32[2,1], index: 2, kind: input, shape index: {}]
  %s3 = inlined_call_operand.vmem [shape: s32[2,1], index: 3, kind: input, shape index: {}]
  %s4 = inlined_call_operand.hbm [shape: f32[1,1], index: 4, kind: output, shape index: {}]
  %s5 = sld [smem:[#allocation0]]
  $region26: #{qa_module_forward.3} parent=0
    _
  %s7 = ssub.s32 1, %s5
  %s8 = scalar_select 0, %s7, %s5
  $region1: #{qa_module_forward.3} parent=0
    #allocation2 [shape = 'u8[512]{0}', space=smem, size = 0x200, scoped, tag = 'output window, operand 0, single buffered']
    #allocation3 [shape = 's32[1]{0}', space=sflag, size = 0x4, scoped, tag = 'scoped memory for qa_module_forward.3']
    %9 = vsyncpa [#allocation3], 0
    // Predicated region
    $region2: #{qa_module_forward.3} parent=1 // pred_check
      _
    $region3: #{qa_module_forward.3} parent=1 // pred_check_branch
      %11 = sbr.rel (0) target = $region5
    $region4: #{qa_module_forward.3} parent=1 // pred_region
      _
    $region5: #{qa_module_forward.3} parent=1 // pred_fallthru
      _
    // Predicated region
    $region6: #{qa_module_forward.3} parent=1 // pred_check
      _
    $region7: #{qa_module_forward.3} parent=1 // pred_check_branch
      %13 = sbr.rel (0) target = $region9
    $region8: #{qa_module_forward.3} parent=1 // pred_region
      _
    $region9: #{qa_module_forward.3} parent=1 // pred_fallthru
      _
    // Predicated region
    $region10: #{qa_module_forward.3} parent=1 // pred_check
      _
    $region11: #{qa_module_forward.3} parent=1 // pred_check_branch
      %15 = sbr.rel (0) target = $region13
    $region12: #{qa_module_forward.3} parent=1 // pred_region
      _
    $region13: #{qa_module_forward.3} parent=1 // pred_fallthru
      _
    // Predicated region
    $region14: #{qa_module_forward.3} parent=1 // pred_check
      _
    $region15: #{qa_module_forward.3} parent=1 // pred_check_branch
      %17 = sbr.rel (0) target = $region17
    $region16: #{qa_module_forward.3} parent=1 // pred_region
      _
    $region17: #{qa_module_forward.3} parent=1 // pred_fallthru
      _
    %v18 = vld [vmem:[%s0] sm:$0x3]
    %v19 = vld [vmem:[%s2] sm:$0x3]
    %vm20 = vcmask 58368
    %v21 = vsel %vm20, %v18, -inf
    %22 = vmax.xlane.f32.xlu0 %v21
    %v23 = vpop.xlane.xlu0 %22
    %v24 = vsub.f32 %v18, %v23
    %v25 = vmul.f32 %v24, 1.442695
    %v26 = vpow.pop %v25
    %v27 = vsel %vm20, %v26, 0.0
    %28 = vadd.xlane.f32.xlu0 %v27
    %v29 = vpop.xlane.xlu0 %28
    %v30 = vlog2.pop %v29
    %v31 = vmul.f32 %v30, 0.6931472
    %v32 = vadd.f32 %v23, %v31
    %v33 = vlaneseq
    %v34 = vand.u32 %v33, 127
    %35 = vset.pattern.permute.xlu0 0
    %36 = vperm.xlu0 %35, %v19
    %v37 = vpop.permute.xlu0 %36
    %vm38 = vcmp.eq.s32.totalorder %v34, %v37
    %v39 = vsel %vm38, 1, 0
    %v40 = vcvt.s32.f32 %v39
    %v41 = vmul.f32 %v18, %v40
    %v42 = vsel %vm20, %v41, 0.0
    %43 = vadd.xlane.f32.xlu0 %v42
    %v44 = vpop.xlane.xlu0 %43
    %vm45 = vcmp.ne.s32.totalorder %v19, 0
    %v46 = vsub.f32 %v32, %v44
    %v47 = vsel %vm45, %v46, 0.0
    %vm48 = vcmask 1024
    %v49 = vsel %vm48, %v47, 0.0
    %50 = vadd.xlane.f32.xlu0 %v49
    %v51 = vpop.xlane.xlu0 %50
    %v52 = vrot.slane %v51, 4
    %v53 = vadd.f32 %v51, %v52
    %v54 = vrot.slane %v53, 2
    %v55 = vadd.f32 %v53, %v54
    %v56 = vrot.slane %v55, 1
    %v57 = vadd.f32 %v55, %v56
    %s58 = vtos %v57
    %v59 = vrcp.pop 2.0
    %s60 = vtos %v59
    %s61 = smul.f32 %s58, %s60
    %v62 = vld [vmem:[%s1] sm:$0x3]
    %v63 = vld [vmem:[%s3] sm:$0x3]
    %v64 = vsel %vm20, %v62, -inf
    %65 = vmax.xlane.f32.xlu0 %v64
    %v66 = vpop.xlane.xlu0 %65
    %v67 = vsub.f32 %v62, %v66
    %v68 = vmul.f32 %v67, 1.442695
    %v69 = vpow.pop %v68
    %v70 = vsel %vm20, %v69, 0.0
    %71 = vadd.xlane.f32.xlu0 %v70
    %v72 = vpop.xlane.xlu0 %71
    %v73 = vlog2.pop %v72
    %v74 = vmul.f32 %v73, 0.6931472
    %v75 = vadd.f32 %v66, %v74
    %76 = vset.pattern.permute.xlu0 0
    %77 = vperm.xlu0 %76, %v63
    %v78 = vpop.permute.xlu0 %77
    %vm79 = vcmp.eq.s32.totalorder %v34, %v78
    %v80 = vsel %vm79, 1, 0
    %v81 = vcvt.s32.f32 %v80
    %v82 = vmul.f32 %v62, %v81
    %v83 = vsel %vm20, %v82, 0.0
    %84 = vadd.xlane.f32.xlu0 %v83
    %v85 = vpop.xlane.xlu0 %84
    %vm86 = vcmp.ne.s32.totalorder %v63, 0
    %v87 = vsub.f32 %v75, %v85
    %v88 = vsel %vm86, %v87, 0.0
    %v89 = vsel %vm48, %v88, 0.0
    %90 = vadd.xlane.f32.xlu0 %v89
    %v91 = vpop.xlane.xlu0 %90
    %v92 = vrot.slane %v91, 4
    %v93 = vadd.f32 %v91, %v92
    %v94 = vrot.slane %v93, 2
    %v95 = vadd.f32 %v93, %v94
    %v96 = vrot.slane %v95, 1
    %v97 = vadd.f32 %v95, %v96
    %s98 = vtos %v97
    %v99 = vrcp.pop 2.0
    %s100 = vtos %v99
    %s101 = smul.f32 %s98, %s100
    %s102 = sadd.f32 %s61, %s101
    %s103 = scalar_lea.smem [#allocation2], 0
    %104 = sst [smem:[%s103]] %s102
    // Predicated region
    $region18: #{qa_module_forward.3} parent=1 // pred_check
      _
    $region19: #{qa_module_forward.3} parent=1 // pred_check_branch
      %106 = sbr.rel (0) target = $region21
    $region20: #{qa_module_forward.3} parent=1 // pred_region
      %s108 = ssub.s32 16, 16
      %109 = vsyncadd [#allocation3], %s108
      %112 = dma.smem_to_hbm [#allocation2], 16, %s4, [#allocation3]
    $region21: #{qa_module_forward.3} parent=1 // pred_fallthru
      _
    // Predicated region
    $region22: #{qa_module_forward.3} parent=1 // pred_check
      _
    $region23: #{qa_module_forward.3} parent=1 // pred_check_branch
      %114 = sbr.rel (0) target = $region25
    $region24: #{qa_module_forward.3} parent=1 // pred_region
      %115 = dma.done [#allocation3], 16
    $region25: #{qa_module_forward.3} parent=1 // pred_fallthru
      _
    %116 = sfence
    %117 = vsyncpa [#allocation3], 1

// kernel: qa_module_forward.2
$region0: #{qa_module_forward.2}
  #allocation0 [shape = 'u32[]', space=smem, size = 0x4, offset = 0x4, fixed_abs, tag = 'smem constant byte address 0x4 - core index']
  #allocation1 [shape = 'u32[144,128]{1,0:T(1,128)}', space=vmem, size = 0x12000, scoped, tag = 'internal scratch']
  %s0 = inlined_call_operand.vmem [shape: bf16[16,32], index: 0, kind: input, shape index: {}]
  %s1 = inlined_call_operand.vmem [shape: bf16[2,32], index: 1, kind: input, shape index: {}]
  %s2 = inlined_call_operand.vmem [shape: f32[2], index: 2, kind: input, shape index: {}]
  %s3 = inlined_call_operand.vmem [shape: f32[1,16], index: 3, kind: output, shape index: {0}]
  %s4 = inlined_call_operand.vmem [shape: f32[1,16], index: 4, kind: output, shape index: {1}]
  %5 = xla_tuple %s3, %s4
  %s6 = sld [smem:[#allocation0]]
  $region34: #{qa_module_forward.2} parent=0
    _
  %s8 = ssub.s32 1, %s6
  %s9 = scalar_select 0, %s8, %s6
  $region1: #{qa_module_forward.2} parent=0
    #allocation2 [shape = 'u8[512]{0}', space=smem, size = 0x200, scoped, tag = 'input window, operand 2, single buffered']
    #allocation3 [shape = 's32[1]{0}', space=sflag, size = 0x4, scoped, tag = 'scoped memory for qa_module_forward.2']
    %10 = vsyncpa [#allocation3], 0
    // Predicated region
    $region2: #{qa_module_forward.2} parent=1 // pred_check
      _
    $region3: #{qa_module_forward.2} parent=1 // pred_check_branch
      %12 = sbr.rel (0) target = $region5
    $region4: #{qa_module_forward.2} parent=1 // pred_region
      _
    $region5: #{qa_module_forward.2} parent=1 // pred_fallthru
      _
    // Predicated region
    $region6: #{qa_module_forward.2} parent=1 // pred_check
      _
    $region7: #{qa_module_forward.2} parent=1 // pred_check_branch
      %14 = sbr.rel (0) target = $region9
    $region8: #{qa_module_forward.2} parent=1 // pred_region
      _
    $region9: #{qa_module_forward.2} parent=1 // pred_fallthru
      _
    // Predicated region
    $region10: #{qa_module_forward.2} parent=1 // pred_check
      _
    $region11: #{qa_module_forward.2} parent=1 // pred_check_branch
      %16 = sbr.rel (0) target = $region13
    $region12: #{qa_module_forward.2} parent=1 // pred_region
      %s18 = ssub.s32 16, 16
      %19 = vsyncadd [#allocation3], %s18
      %s21 = sshll.u32 %s2, 4
      %s22 = int_to_ptr.vmem [resolvable:$true] %s21
      %24 = dma.vmem_to_smem %s22, 16, [#allocation2], [#allocation3]
    $region13: #{qa_module_forward.2} parent=1 // pred_fallthru
      _
    // Predicated region
    $region14: #{qa_module_forward.2} parent=1 // pred_check
      _
    $region15: #{qa_module_forward.2} parent=1 // pred_check_branch
      %26 = sbr.rel (0) target = $region17
    $region16: #{qa_module_forward.2} parent=1 // pred_region
      %27 = dma.done [#allocation3], 16
    $region17: #{qa_module_forward.2} parent=1 // pred_fallthru
      _
    %28 = sfence
    %v30 = vld [vmem:[%s1] sm:$0x1]
    %v31 = vld [vmem:[%s0] sm:$0xf]
    %v32 = vld [vmem:[%s0 + $0x4] sm:$0xf]
    %v35 = vunpack.c.l.b16 %v31
    %v36 = vunpack.c.l.b16 %v32
    %v37 = vpack.c.b16 %v36, %v35
    %vm38 = vcmask 261120
    %v40 = vsel %vm38, %v30, 0
    %v43 = vsel %vm38, %v37, 0
    %45 = vmatprep.subr.bf16.mxu0 0
    %46 = vmatpush1.bf16.xpose.msra.mxu0 %v43
    %47 = vmatprep.subr.bf16.mxu0 0
    %48 = vmatpush1.bf16.xpose.msra.mxu0 0
    %49 = vmatprep.subr.bf16.mxu0 0
    %50 = vmatpush1.bf16.xpose.msra.mxu0 0
    %51 = vmatprep.subr.bf16.mxu0 0
    %52 = vmatpush1.bf16.xpose.msra.mxu0 0
    %53 = vmatprep.subr.bf16.mxu0 0
    %54 = vmatpush1.bf16.xpose.msra.mxu0 0
    %55 = vmatprep.subr.bf16.mxu0 0
    %56 = vmatpush1.bf16.xpose.msra.mxu0 0
    %57 = vmatprep.subr.bf16.mxu0 0
    %58 = vmatpush1.bf16.xpose.msra.mxu0 0
    %59 = vmatprep.subr.bf16.mxu0 0
    %60 = vmatpush1.bf16.xpose.msra.mxu0 0
    %61 = vmatprep.subr.bf16.mxu0 0
    %62 = vmatpush1.bf16.xpose.msra.mxu0 0
    %63 = vmatprep.subr.bf16.mxu0 0
    %64 = vmatpush1.bf16.xpose.msra.mxu0 0
    %65 = vmatprep.subr.bf16.mxu0 0
    %66 = vmatpush1.bf16.xpose.msra.mxu0 0
    %67 = vmatprep.subr.bf16.mxu0 0
    %68 = vmatpush1.bf16.xpose.msra.mxu0 0
    %69 = vmatprep.subr.bf16.mxu0 0
    %70 = vmatpush1.bf16.xpose.msra.mxu0 0
    %71 = vmatprep.subr.bf16.mxu0 0
    %72 = vmatpush1.bf16.xpose.msra.mxu0 0
    %73 = vmatprep.subr.bf16.mxu0 0
    %74 = vmatpush1.bf16.xpose.msra.mxu0 0
    %75 = vmatprep.subr.bf16.mxu0 0
    %76 = vmatpush1.bf16.xpose.msra.mxu0 0
    %77 = vmatprep.mubr.bf16.mxu0 0
    %78 = vmatmul.mubr.bf16.gmra.mrb[0].mxu0 %v40
    %v79 = vpop.f32.mrb[0].mxu0
    %v80 = vadd.f32 0.0, %v79
    %v81 = vpop.f32.mrb[0].mxu0
    %v82 = vpop.f32.mrb[0].mxu0
    %v83 = vpop.f32.mrb[0].mxu0
    %84 = vdwg.mxu0
    %s85 = sld [smem:[#allocation2]]
    %s86 = sld [smem:[#allocation2 + $0x1]]
    %v87 = vstv %s85
    %v88 = vadd.f32 %v80, %v87
    %v89 = vmax.f32 %v88, 0.0
    %vm90 = vcmask 122880
    %91 = vst.msk [vmem:[%s3] sm:$0x1] %vm90, %v89
    %v92 = vstv %s86
    %v93 = vadd.f32 %v80, %v92
    %v94 = vmax.f32 %v93, 0.0
    %vm95 = vcmask 123905
    %96 = vst.msk [vmem:[%s4 - $0x1] sm:$0x2] %vm95, %v94
    // Predicated region
    $region18: #{qa_module_forward.2} parent=1 // pred_check
      _
    $region19: #{qa_module_forward.2} parent=1 // pred_check_branch
      %98 = sbr.rel (0) target = $region21
    $region20: #{qa_module_forward.2} parent=1 // pred_region
      _
    $region21: #{qa_module_forward.2} parent=1 // pred_fallthru
      _
    // Predicated region
    $region22: #{qa_module_forward.2} parent=1 // pred_check
      _
    $region23: #{qa_module_forward.2} parent=1 // pred_check_branch
      %100 = sbr.rel (0) target = $region25
    $region24: #{qa_module_forward.2} parent=1 // pred_region
      _
    $region25: #{qa_module_forward.2} parent=1 // pred_fallthru
      _
    // Predicated region
    $region26: #{qa_module_forward.2} parent=1 // pred_check
      _
    $region27: #{qa_module_forward.2} parent=1 // pred_check_branch
      %102 = sbr.rel (0) target = $region29
    $region28: #{qa_module_forward.2} parent=1 // pred_region
      _
    $region29: #{qa_module_forward.2} parent=1 // pred_fallthru
      _
    // Predicated region
    $region30: #{qa_module_forward.2} parent=1 // pred_check
      _
    $region31: #{qa_module_forward.2} parent=1 // pred_check_branch
      %104 = sbr.rel (0) target = $region33
    $region32: #{qa_module_forward.2} parent=1 // pred_region
      _
    $region33: #{qa_module_forward.2} parent=1 // pred_fallthru
      _
    %105 = vsyncpa [#allocation3], 1

</llo_original>
